<compile_context>
chip_gen: v7x
topology: tpu7x:2x2x1
jax: 0.10.0
libtpu: 0.0.40
codegen_flags: <defaults>
</compile_context>

<pallas_src>
import jax
import jax.numpy as jnp
from jax.experimental import pallas as pl
from jax.experimental.pallas import tpu as pltpu

LEAKY_SLOPE = 0.01   # nn.LeakyReLU default negative_slope (module uses default)
BN_EPS = 1e-5        # nn.BatchNorm2d default eps


def _round_up(a, b):
    return (a + b - 1) // b * b


# --------------------------- 1x1 conv (tiled matmul) -------------------------
def _matmul_bias_lrelu_kernel(x_ref, w_ref, b_ref, o_ref, acc_ref):
    # x_ref: (tm, tk) bf16 activations
    # w_ref: (tk, tn) bf16 weights (BN scale folded in)
    # b_ref: (1, tn)  f32 folded BN bias
    # o_ref: (tm, tn) f32 output tile
    # acc_ref: (tm, tn) f32 VMEM accumulator, persists across the K grid axis.
    k = pl.program_id(2)

    @pl.when(k == 0)
    def _init():
        acc_ref[...] = jnp.zeros_like(acc_ref)

    acc_ref[...] += jnp.dot(x_ref[...], w_ref[...],
                            preferred_element_type=jnp.float32)

    @pl.when(k == pl.num_programs(2) - 1)
    def _finalize():
        y = acc_ref[...] + b_ref[...]
        o_ref[...] = jnp.where(y > 0.0, y, LEAKY_SLOPE * y).astype(o_ref.dtype)


def _matmul_bias_lrelu(x2d, w2d, bias_row):
    """leaky(x2d @ w2d + bias) with MXU-friendly padding/tiling."""
    m, k = x2d.shape
    _, cout_pad = w2d.shape

    tn = 256 if cout_pad % 256 == 0 else 128          # lane-dense output tiles
    tm = 512 if m >= 2048 else min(256, _round_up(m, 8))
    m_pad = _round_up(m, tm)
    if k > 512:                                       # tile K only when large
        tk = 512
        k_pad = _round_up(k, tk)
    else:
        tk, k_pad = k, k

    if (m_pad, k_pad) != (m, k):
        x2d = jnp.pad(x2d, ((0, m_pad - m), (0, k_pad - k)))
    if k_pad != k:
        w2d = jnp.pad(w2d, ((0, k_pad - k), (0, 0)))

    grid = (m_pad // tm, cout_pad // tn, k_pad // tk)
    # Per-step VMEM use is a few MB at the largest tiles -> fits the default
    # scoped VMEM on v5e (16 MiB) / v6e / v7x (32 MiB) with double-buffering.
    return pl.pallas_call(
        _matmul_bias_lrelu_kernel,
        out_shape=jax.ShapeDtypeStruct((m_pad, cout_pad), jnp.float32),
        grid_spec=pltpu.PrefetchScalarGridSpec(
            num_scalar_prefetch=0,
            grid=grid,
            in_specs=[
                pl.BlockSpec((tm, tk), lambda i, j, kk: (i, kk)),
                pl.BlockSpec((tk, tn), lambda i, j, kk: (kk, j)),
                pl.BlockSpec((1, tn), lambda i, j, kk: (0, j)),
            ],
            out_specs=pl.BlockSpec((tm, tn), lambda i, j, kk: (i, j)),
            scratch_shapes=[pltpu.VMEM((tm, tn), jnp.float32)],
        ),
        compiler_params=pltpu.CompilerParams(
            dimension_semantics=("parallel", "parallel", "arbitrary")),
    )(x2d, w2d, bias_row)


# --------------------- 3x3 conv (in-kernel shifted matmuls) ------------------
def _conv3x3_bias_lrelu_kernel(r0_ref, r1_ref, r2_ref, w_ref, b_ref, o_ref):
    # r*_ref: (1, W+2, Cin) bf16 padded input rows h, h+1, h+2 of one image.
    # w_ref : (3, 3, Cin, tn) bf16 conv weight with BN scale folded in.
    # b_ref : (1, tn) f32 folded BN bias.
    # o_ref : (1, 1, W, tn) f32 output row tile.
    w_out = o_ref.shape[2]
    tn = o_ref.shape[3]
    acc = jnp.zeros((w_out, tn), jnp.float32)
    rows = (r0_ref, r1_ref, r2_ref)
    for di in range(3):
        row = rows[di][0]                                   # (W+2, Cin)
        for dj in range(3):
            acc = acc + jnp.dot(row[dj:dj + w_out, :], w_ref[di, dj],
                                preferred_element_type=jnp.float32)
    y = acc + b_ref[...]
    o_ref[0, 0] = jnp.where(y > 0.0, y, LEAKY_SLOPE * y).astype(o_ref.dtype)


def _conv3x3_bias_lrelu(x_nhwc, w_folded, bias_row):
    n, hgt, wid, cin = x_nhwc.shape
    cout_pad = w_folded.shape[-1]
    tn = 256 if cout_pad % 256 == 0 else 128
    wp = wid + 2

    # Pad spatially once (padding=1). Rows are streamed into the kernel with a
    # 1-row halo via three BlockSpecs on the same padded array -> no 9x im2col
    # tensor ever touches HBM.
    xp = jnp.pad(x_nhwc, ((0, 0), (1, 1), (1, 1), (0, 0)))
    xp_rows = xp.reshape(n * (hgt + 2), wp, cin)

    def _row_spec(di):
        return pl.BlockSpec(
            (1, wp, cin),
            lambda ni, hi, j, _di=di: (ni * (hgt + 2) + hi + _di, 0, 0))

    grid = (n, hgt, cout_pad // tn)
    # Note: one output row per grid step keeps the BlockSpecs simple; multi-row
    # blocking would need halo DMA (manual make_async_copy) for higher MXU
    # utilization on large spatial sizes.
    return pl.pallas_call(
        _conv3x3_bias_lrelu_kernel,
        out_shape=jax.ShapeDtypeStruct((n, hgt, wid, cout_pad), jnp.float32),
        grid_spec=pltpu.PrefetchScalarGridSpec(
            num_scalar_prefetch=0,
            grid=grid,
            in_specs=[
                _row_spec(0), _row_spec(1), _row_spec(2),
                pl.BlockSpec((3, 3, cin, tn), lambda ni, hi, j: (0, 0, 0, j)),
                pl.BlockSpec((1, tn), lambda ni, hi, j: (0, j)),
            ],
            out_specs=pl.BlockSpec((1, 1, wid, tn),
                                   lambda ni, hi, j: (ni, hi, 0, j)),
        ),
        compiler_params=pltpu.CompilerParams(
            dimension_semantics=("parallel", "parallel", "parallel")),
    )(xp_rows, xp_rows, xp_rows, w_folded, bias_row)


# ------------------------------ JAX wrappers ---------------------------------
def basic_block_forward_nhwc(x_nhwc, params, kernel_size=(1, 1),
                             compute_dtype=jnp.bfloat16):
    """BasicBlock.forward on NHWC tensors (inference / eval-mode BN).

    Prefer this entry point when chaining blocks: it avoids per-block
    NCHW<->NHWC transposes (each is a full HBM round-trip of the activation).
    """
    conv_w = params["conv_w"]             # (Cout, Cin, kh, kw) PyTorch layout
    gamma = params["bn_weight"]
    beta = params["bn_bias"]
    mean = params["bn_running_mean"]
    var = params["bn_running_var"]

    n, hgt, wid, cin = x_nhwc.shape
    cout = conv_w.shape[0]
    cout_pad = _round_up(max(cout, 128), 128)     # lane-dense output channels

    # Fold eval-mode BN into a per-channel affine; the scale goes into the
    # weights so the kernel epilogue is only bias-add + LeakyReLU.
    scale = gamma * jax.lax.rsqrt(var + BN_EPS)            # (Cout,)
    bias = beta - mean * scale                             # (Cout,)
    bias_row = jnp.zeros((1, cout_pad), jnp.float32).at[0, :cout].set(bias)

    if kernel_size[0] == 1:
        w2d = conv_w.reshape(cout, cin).T * scale[None, :]       # (Cin, Cout)
        w2d = jnp.zeros((cin, cout_pad), w2d.dtype).at[:, :cout].set(w2d)
        x2d = x_nhwc.reshape(n * hgt * wid, cin)
        out2d = _matmul_bias_lrelu(x2d.astype(compute_dtype),
                                   w2d.astype(compute_dtype), bias_row)
        return out2d[:n * hgt * wid, :cout].reshape(n, hgt, wid, cout)
    elif kernel_size[0] == 3:
        # (Cout, Cin, kh, kw) -> (kh, kw, Cin, Cout), scale folded per Cout.
        wf = jnp.transpose(conv_w, (2, 3, 1, 0)) * scale[None, None, None, :]
        wf = jnp.zeros((3, 3, cin, cout_pad), wf.dtype).at[..., :cout].set(wf)
        out = _conv3x3_bias_lrelu(x_nhwc.astype(compute_dtype),
                                  wf.astype(compute_dtype), bias_row)
        return out[..., :cout]
    else:
        raise ValueError("only 1x1 and 3x3 kernels are supported")


def basic_block_forward(x_nchw, params, kernel_size=(1, 1)):
    """PyTorch-convention (NCHW) wrapper around the NHWC implementation."""
    x_nhwc = jnp.transpose(x_nchw, (0, 2, 3, 1))
    y_nhwc = basic_block_forward_nhwc(x_nhwc, params, kernel_size)
    return jnp.transpose(y_nhwc, (0, 3, 1, 2))


def _reference_forward(x_nchw, params, kernel_size=(1, 1)):
    """Plain-JAX (f32) reference for correctness checking."""
    conv_w = params["conv_w"]
    pad = 0 if kernel_size[0] == 1 else 1
    y = jax.lax.conv_general_dilated(
        x_nchw, conv_w, window_strides=(1, 1),
        padding=[(pad, pad), (pad, pad)],
        dimension_numbers=("NCHW", "OIHW", "NCHW"))
    s = params["bn_weight"] / jnp.sqrt(params["bn_running_var"] + BN_EPS)
    b = params["bn_bias"] - params["bn_running_mean"] * s
    y = y * s[None, :, None, None] + b[None, :, None, None]
    return jnp.where(y > 0, y, LEAKY_SLOPE * y)


def make_params(key, in_planes, out_planes, kernel_size):
    kh = kernel_size[0]
    k1, k2, k3, k4, k5 = jax.random.split(key, 5)
    return {
        "conv_w": jax.random.normal(k1, (out_planes, in_planes, kh, kh),
                                    jnp.float32) * 0.1,
        "bn_weight": 1.0 + 0.1 * jax.random.normal(k2, (out_planes,), jnp.float32),
        "bn_bias": 0.1 * jax.random.normal(k3, (out_planes,), jnp.float32),
        "bn_running_mean": 0.1 * jax.random.normal(k4, (out_planes,), jnp.float32),
        "bn_running_var": jnp.abs(1.0 + 0.1 * jax.random.normal(
            k5, (out_planes,), jnp.float32)),
    }


if __name__ == "__main__":
    key = jax.random.PRNGKey(0)
    kx, kp1, kp3 = jax.random.split(key, 3)

    # Small shapes consistent with the module: batch=2, Cin=4, H=W=16, Cout=8.
    N, CIN, H, W = 2, 4, 16, 16
    COUT = 8
    x = jax.random.normal(kx, (N, CIN, H, W), jnp.float32)

    # Default BasicBlock: kernel_size=(1, 1)
    params1 = make_params(kp1, CIN, COUT, (1, 1))
    out1 = basic_block_forward(x, params1, kernel_size=(1, 1))
    jax.block_until_ready(out1)
    ref1 = _reference_forward(x, params1, kernel_size=(1, 1))
    assert out1.shape == ref1.shape
    # bf16 MXU inputs -> compare with bf16-appropriate tolerances.
    assert jnp.allclose(out1, ref1, atol=3e-2, rtol=3e-2), float(
        jnp.max(jnp.abs(out1 - ref1)))

    # 3x3 variant supported by the module.
    params3 = make_params(kp3, CIN, COUT, (3, 3))
    out3 = basic_block_forward(x, params3, kernel_size=(3, 3))
    jax.block_until_ready(out3)
    ref3 = _reference_forward(x, params3, kernel_size=(3, 3))
    assert out3.shape == ref3.shape
    assert jnp.allclose(out3, ref3, atol=3e-2, rtol=3e-2), float(
        jnp.max(jnp.abs(out3 - ref3)))

    print("KERNEL_OK")
</pallas_src>

<mosaic_0001>
module attributes {stable_mosaic.version = 11 : i64} {
  func.func @_matmul_bias_lrelu_kernel(%arg0: i32, %arg1: i32, %arg2: i32, %arg3: memref<256x4xbf16, #tpu.memory_space<vmem>>, %arg4: memref<4x128xbf16, #tpu.memory_space<vmem>>, %arg5: memref<1x128xf32, #tpu.memory_space<vmem>>, %arg6: memref<256x128xf32, #tpu.memory_space<vmem>>, %arg7: memref<256x128xf32, #tpu.memory_space<vmem>>) attributes {dimension_semantics = [#tpu.dimension_semantics<parallel>, #tpu.dimension_semantics<parallel>, #tpu.dimension_semantics<arbitrary>], iteration_bounds = array<i64: 2, 1, 1>, scalar_prefetch = 0 : i64, scratch_operands = 1 : i64, tpu.core_type = #tpu.core_type<tc>, window_params = [{transform_indices = @transform_0, window_bounds = array<i64: 256, 4>}, {transform_indices = @transform_1, window_bounds = array<i64: 4, 128>}, {transform_indices = @transform_2, window_bounds = array<i64: 1, 128>}, {transform_indices = @transform_3, window_bounds = array<i64: 256, 128>}]} {
    %c0_i32 = arith.constant 0 : i32
    %0 = arith.cmpi eq, %arg2, %c0_i32 : i32
    %1 = arith.extui %0 : i1 to i32
    %c0_i32_0 = arith.constant 0 : i32
    %2 = arith.cmpi ne, %1, %c0_i32_0 : i32
    scf.if %2 {
      %cst_10 = arith.constant 0.000000e+00 : f32
      %12 = vector.broadcast %cst_10 : f32 to vector<256x128xf32>
      %c0_11 = arith.constant 0 : index
      %c0_12 = arith.constant 0 : index
      %13 = vector.load %arg7[%c0_11, %c0_12] : memref<256x128xf32, #tpu.memory_space<vmem>>, vector<256x128xf32>
      tpu.vector_store %arg7[%c0_11, %c0_12], %12 {strides = array<i32>} : memref<256x128xf32, #tpu.memory_space<vmem>>, vector<256x128xf32>,
    } else {
    }
    %c0 = arith.constant 0 : index
    %c0_1 = arith.constant 0 : index
    %3 = vector.load %arg7[%c0, %c0_1] : memref<256x128xf32, #tpu.memory_space<vmem>>, vector<256x128xf32>
    %c0_2 = arith.constant 0 : index
    %c0_3 = arith.constant 0 : index
    %4 = vector.load %arg3[%c0_2, %c0_3] : memref<256x4xbf16, #tpu.memory_space<vmem>>, vector<256x4xbf16>
    %c0_4 = arith.constant 0 : index
    %c0_5 = arith.constant 0 : index
    %5 = vector.load %arg4[%c0_4, %c0_5] : memref<4x128xbf16, #tpu.memory_space<vmem>>, vector<4x128xbf16>
    %cst = arith.constant dense<0.000000e+00> : vector<256x128xf32>
    %6 = tpu.matmul %4, %5, %cst {dimension_numbers = #tpu.dot_dimension_numbers<[1], [0], [0], [1], [0, 0, 1, 1], [], []>} : vector<256x4xbf16>, vector<4x128xbf16>, vector<256x128xf32> -> vector<256x128xf32>
    %7 = arith.addf %3, %6 : vector<256x128xf32>
    %c0_6 = arith.constant 0 : index
    %c0_7 = arith.constant 0 : index
    %8 = vector.load %arg7[%c0_6, %c0_7] : memref<256x128xf32, #tpu.memory_space<vmem>>, vector<256x128xf32>
    tpu.vector_store %arg7[%c0_6, %c0_7], %7 {strides = array<i32>} : memref<256x128xf32, #tpu.memory_space<vmem>>, vector<256x128xf32>,
    %c0_i32_8 = arith.constant 0 : i32
    %9 = arith.cmpi eq, %arg2, %c0_i32_8 : i32
    %10 = arith.extui %9 : i1 to i32
    %c0_i32_9 = arith.constant 0 : i32
    %11 = arith.cmpi ne, %10, %c0_i32_9 : i32
    scf.if %11 {
      %c0_10 = arith.constant 0 : index
      %c0_11 = arith.constant 0 : index
      %12 = vector.load %arg7[%c0_10, %c0_11] : memref<256x128xf32, #tpu.memory_space<vmem>>, vector<256x128xf32>
      %c0_12 = arith.constant 0 : index
      %c0_13 = arith.constant 0 : index
      %13 = vector.load %arg5[%c0_12, %c0_13] : memref<1x128xf32, #tpu.memory_space<vmem>>, vector<1x128xf32>
      %14 = vector.broadcast %13 : vector<1x128xf32> to vector<256x128xf32>
      %15 = arith.addf %12, %14 : vector<256x128xf32>
      %cst_14 = arith.constant 0.000000e+00 : f32
      %16 = vector.broadcast %cst_14 : f32 to vector<256x128xf32>
      %17 = arith.cmpf ogt, %15, %16 : vector<256x128xf32>
      %cst_15 = arith.constant 0.00999999977 : f32
      %18 = vector.broadcast %cst_15 : f32 to vector<256x128xf32>
      %19 = arith.mulf %18, %15 : vector<256x128xf32>
      %20 = arith.select %17, %15, %19 : vector<256x128xi1>, vector<256x128xf32>
      %c0_16 = arith.constant 0 : index
      %c0_17 = arith.constant 0 : index
      %21 = vector.load %arg6[%c0_16, %c0_17] : memref<256x128xf32, #tpu.memory_space<vmem>>, vector<256x128xf32>
      tpu.vector_store %arg6[%c0_16, %c0_17], %20 {strides = array<i32>} : memref<256x128xf32, #tpu.memory_space<vmem>>, vector<256x128xf32>,
    } else {
    }
    return
  }
  func.func @transform_0(%arg0: i32, %arg1: i32, %arg2: i32) -> (i32, i32) {
    %c0_i32 = arith.constant 0 : i32
    return %arg0, %arg2 : i32, i32
  }
  func.func @transform_1(%arg0: i32, %arg1: i32, %arg2: i32) -> (i32, i32) {
    %c0_i32 = arith.constant 0 : i32
    return %arg2, %arg1 : i32, i32
  }
  func.func @transform_2(%arg0: i32, %arg1: i32, %arg2: i32) -> (i32, i32) {
    %c0_i32 = arith.constant 0 : i32
    %c0_i32_0 = arith.constant 0 : i32
    return %c0_i32, %arg1 : i32, i32
  }
  func.func @transform_3(%arg0: i32, %arg1: i32, %arg2: i32) -> (i32, i32) {
    %c0_i32 = arith.constant 0 : i32
    return %arg0, %arg1 : i32, i32
  }
}

</mosaic_0001>

<llo_original>
// kernel: tpu_custom_call.1
$region0: #{tpu_custom_call.1}
  #allocation0 [shape = 'u32[]', space=smem, size = 0x4, offset = 0x4, fixed_abs, tag = 'smem constant byte address 0x4 - core index']
  #allocation1 [shape = 'u32[144,128]{1,0:T(1,128)}', space=vmem, size = 0x12000, scoped, tag = 'internal scratch']
  #allocation2 [shape = 'f32[256,128]{1,0:T(8,128)}', space=vmem, size = 0x20000, scoped, tag = 'scratch operand']
  %s0 = inlined_call_operand.vmem [shape: bf16[512,4], index: 0, kind: input, shape index: {}]
  %s1 = inlined_call_operand.vmem [shape: bf16[4,128], index: 1, kind: input, shape index: {}]
  %s2 = inlined_call_operand.vmem [shape: f32[1,128], index: 2, kind: input, shape index: {}]
  %s3 = inlined_call_operand.hbm [shape: f32[512,128], index: 3, kind: output, shape index: {}]
  %s4 = sld [smem:[#allocation0]]
  $region53: #{tpu_custom_call.1} parent=0
    _
  %s6 = ssub.s32 1, %s4
  %s7 = scalar_select 0, %s6, %s4
  $region1: #{tpu_custom_call.1} parent=0
    #allocation3 [shape = 'u8[262144]{0}', space=vmem, size = 0x40000, scoped, tag = 'output window, operand 0']
    #allocation4 [shape = 's32[2]{0}', space=sflag, size = 0x8, scoped, tag = 'scoped memory for tpu_custom_call.1']
    %8 = vsyncpa [#allocation4], 0
    %s9 = scalar_lea.sflag [#allocation4], 1
    %10 = vsyncpa %s9, 0
    loop: start=0, step=1, limit=4
    $region2: #{tpu_custom_call.1} parent=1 // loop_pre_header
      _
    $region3: #{tpu_custom_call.1} parent=1 // loop_header
      %s12 = sphi 0, %s16
      %p13 = scmp.ge.s32.totalorder %s12, 4
      %s19 = sphi 0, %s38
      %s20 = sphi 0, %s34
      %s21 = sphi 0, %s30
      %s22 = sphi 0, %s19
      %s23 = sphi 0, %s20
      %s24 = sphi 0, %s21
      %s25 = sphi 0, %s22
      %s26 = sphi 0, %s23
      %s27 = sphi 0, %s24
      %s43 = sphi 0, %s45
      %s46 = sphi 0, %s43
      %s47 = sphi 0, %s46
      %s63 = sphi 0, %s47
      %s71 = sphi 0, %s73
      %s74 = sphi 0, %s71
      %s75 = sphi 0, %s74
      %s91 = sphi 0, %s75
      %s97 = sphi 0, %s99
      %s100 = sphi 0, %s97
      %s101 = sphi 0, %s100
      %s117 = sphi 0, %s101
      %s125 = sphi 0, %s127
      %s128 = sphi 0, %s125
      %s129 = sphi 0, %s128
      %s145 = sphi 0, %s129
    $region4: #{tpu_custom_call.1} parent=1 // loop_header_branch
      %15 = sbr.rel (%p13) target = $region8
    $region5: #{tpu_custom_call.1} parent=1 // loop_body
      %s17 = ssub.s32 %s12, 1
      %s18 = ssub.s32 %s12, 2
      %s28 = sadd.s32 1, %s21
      %p29 = scmp.ge.s32.totalorder %s28, 1
      %s30 = scalar_select %p29, 0, %s28
      %s31 = sadd.s32 1, %s20
      %s32 = scalar_select %p29, %s31, %s20
      %p33 = scmp.ge.s32.totalorder %s32, 1
      %s34 = scalar_select %p33, 0, %s32
      %s35 = sadd.s32 1, %s19
      %s36 = scalar_select %p33, %s35, %s19
      %p37 = scmp.ge.s32.totalorder %s36, 2
      %s38 = scalar_select %p37, 0, %s36
      %s39 = ssub.s32 %s19, %s38
      %s40 = ssub.s32 %s21, %s30
      %s41 = sor.u32 %s39, %s40
      %p42 = scmp.eq.s32.totalorder %s41, 0
      %s44 = sadd.s32 %s43, 1
      %s45 = scalar_select %p42, %s43, %s44
      %p48 = pneg %p42
      %p49 = scmp.eq.s32.totalorder %s12, 1
      %p50 = por %p48, %p49
      %p51 = scmp.ne.s32.totalorder %s43, %s46
      %p52 = scmp.eq.s32.totalorder %s12, 0
      %p53 = por %p51, %p52
      %p54 = scmp.ne.s32.totalorder %s43, %s46
      %p55 = scmp.eq.s32.totalorder %s17, 1
      %p56 = por %p54, %p55
      %p57 = scmp.ne.s32.totalorder %s46, %s47
      %p58 = scmp.eq.s32.totalorder %s17, 0
      %p59 = por %p57, %p58
      %p60 = scmp.ne.s32.totalorder %s46, %s47
      %p61 = scmp.eq.s32.totalorder %s18, 1
      %p62 = por %p60, %p61
      %p64 = scmp.ne.s32.totalorder %s47, %s63
      %p65 = scmp.eq.s32.totalorder %s18, 0
      %p66 = por %p64, %p65
      %s67 = ssub.s32 %s21, %s30
      %s68 = ssub.s32 %s20, %s34
      %s69 = sor.u32 %s67, %s68
      %p70 = scmp.eq.s32.totalorder %s69, 0
      %s72 = sadd.s32 %s71, 1
      %s73 = scalar_select %p70, %s71, %s72
      %p76 = pneg %p70
      %p77 = scmp.eq.s32.totalorder %s12, 1
      %p78 = por %p76, %p77
      %p79 = scmp.ne.s32.totalorder %s71, %s74
      %p80 = scmp.eq.s32.totalorder %s12, 0
      %p81 = por %p79, %p80
      %p82 = scmp.ne.s32.totalorder %s71, %s74
      %p83 = scmp.eq.s32.totalorder %s17, 1
      %p84 = por %p82, %p83
      %p85 = scmp.ne.s32.totalorder %s74, %s75
      %p86 = scmp.eq.s32.totalorder %s17, 0
      %p87 = por %p85, %p86
      %p88 = scmp.ne.s32.totalorder %s74, %s75
      %p89 = scmp.eq.s32.totalorder %s18, 1
      %p90 = por %p88, %p89
      %p92 = scmp.ne.s32.totalorder %s75, %s91
      %p93 = scmp.eq.s32.totalorder %s18, 0
      %p94 = por %p92, %p93
      %s95 = ssub.s32 %s20, %s34
      %p96 = scmp.eq.s32.totalorder %s95, 0
      %s98 = sadd.s32 %s97, 1
      %s99 = scalar_select %p96, %s97, %s98
      %p102 = pneg %p96
      %p103 = scmp.eq.s32.totalorder %s12, 1
      %p104 = por %p102, %p103
      %p105 = scmp.ne.s32.totalorder %s97, %s100
      %p106 = scmp.eq.s32.totalorder %s12, 0
      %p107 = por %p105, %p106
      %p108 = scmp.ne.s32.totalorder %s97, %s100
      %p109 = scmp.eq.s32.totalorder %s17, 1
      %p110 = por %p108, %p109
      %p111 = scmp.ne.s32.totalorder %s100, %s101
      %p112 = scmp.eq.s32.totalorder %s17, 0
      %p113 = por %p111, %p112
      %p114 = scmp.ne.s32.totalorder %s100, %s101
      %p115 = scmp.eq.s32.totalorder %s18, 1
      %p116 = por %p114, %p115
      %p118 = scmp.ne.s32.totalorder %s101, %s117
      %p119 = scmp.eq.s32.totalorder %s18, 0
      %p120 = por %p118, %p119
      %s121 = ssub.s32 %s19, %s38
      %s122 = ssub.s32 %s20, %s34
      %s123 = sor.u32 %s121, %s122
      %p124 = scmp.eq.s32.totalorder %s123, 0
      %s126 = sadd.s32 %s125, 1
      %s127 = scalar_select %p124, %s125, %s126
      %p130 = pneg %p124
      %p131 = scmp.eq.s32.totalorder %s12, 1
      %p132 = por %p130, %p131
      %p133 = scmp.ne.s32.totalorder %s125, %s128
      %p134 = scmp.eq.s32.totalorder %s12, 0
      %p135 = por %p133, %p134
      %p136 = scmp.ne.s32.totalorder %s125, %s128
      %p137 = scmp.eq.s32.totalorder %s17, 1
      %p138 = por %p136, %p137
      %p139 = scmp.ne.s32.totalorder %s128, %s129
      %p140 = scmp.eq.s32.totalorder %s17, 0
      %p141 = por %p139, %p140
      %p142 = scmp.ne.s32.totalorder %s128, %s129
      %p143 = scmp.eq.s32.totalorder %s18, 1
      %p144 = por %p142, %p143
      %p146 = scmp.ne.s32.totalorder %s129, %s145
      %p147 = scmp.eq.s32.totalorder %s18, 0
      %p148 = por %p146, %p147
      %p149 = scmp.le.s32.totalorder 1, %s12
      %p150 = scmp.lt.s32.totalorder %s12, 3
      %p151 = pnand %p149, %p150
      %p152 = pneg %p151
      // Predicated region
      $region9: #{tpu_custom_call.1} parent=5 // pred_check
        _
      $region10: #{tpu_custom_call.1} parent=5 // pred_check_branch
        %154 = sbr.rel (%p151) target = $region12
      $region11: #{tpu_custom_call.1} parent=5 // pred_region
        %s155 = ssub.s32 %s12, 1
        // Predicated region
        $region13: #{tpu_custom_call.1} parent=11 // pred_check
          %p156 = pneg %p87
        $region14: #{tpu_custom_call.1} parent=11 // pred_check_branch
          %158 = sbr.rel (%p156) target = $region16
        $region15: #{tpu_custom_call.1} parent=11 // pred_region
          %p159 = scmp.lt.s32.totalorder %s24, 0
          %s160 = scalar_select %p159, %s24, 0
          %p161 = scmp.lt.s32.totalorder %s23, 0
          %s162 = scalar_select %p161, %s23, 0
          %s163 = sadd.s32 %s162, %s160
          %s164 = smul.addr %s163, 2
          %s165 = scalar_lea.vmem %s1, %s164
        $region16: #{tpu_custom_call.1} parent=11 // pred_fallthru
          _
        // Predicated region
        $region17: #{tpu_custom_call.1} parent=11 // pred_check
          %p166 = pneg %p113
        $region18: #{tpu_custom_call.1} parent=11 // pred_check_branch
          %168 = sbr.rel (%p166) target = $region20
        $region19: #{tpu_custom_call.1} parent=11 // pred_region
          %p169 = scmp.lt.s32.totalorder %s23, 0
          %s170 = scalar_select %p169, %s23, 0
          %s171 = scalar_lea.vmem %s2, %s170
        $region20: #{tpu_custom_call.1} parent=11 // pred_fallthru
          _
      $region12: #{tpu_custom_call.1} parent=5 // pred_fallthru
        _
      %p172 = scmp.lt.s32.totalorder %s12, 2
      // Predicated region
      $region21: #{tpu_custom_call.1} parent=5 // pred_check
        %p173 = pneg %p172
      $region22: #{tpu_custom_call.1} parent=5 // pred_check_branch
        %175 = sbr.rel (%p173) target = $region24
      $region23: #{tpu_custom_call.1} parent=5 // pred_region
        // Predicated region
        $region25: #{tpu_custom_call.1} parent=23 // pred_check
          %p176 = pneg %p53
        $region26: #{tpu_custom_call.1} parent=23 // pred_check_branch
          %178 = sbr.rel (%p176) target = $region28
        $region27: #{tpu_custom_call.1} parent=23 // pred_region
          %s179 = smul.u32 32, %s19
          %p180 = scmp.lt.s32.totalorder %s179, 63
          %s181 = scalar_select %p180, %s179, 63
          %p182 = scmp.lt.s32.totalorder %s21, 0
          %s183 = scalar_select %p182, %s21, 0
          %s184 = sadd.s32 %s183, %s181
          %s185 = smul.addr %s184, 4
          %s186 = scalar_lea.vmem %s0, %s185
          %s187 = smul.u32 32, %s19
        $region28: #{tpu_custom_call.1} parent=23 // pred_fallthru
          _
      $region24: #{tpu_custom_call.1} parent=5 // pred_fallthru
        _
      %p188 = scmp.le.s32.totalorder 1, %s12
      %p189 = scmp.lt.s32.totalorder %s12, 3
      %p190 = pnand %p188, %p189
      %p191 = pneg %p190
      // Predicated region
      $region29: #{tpu_custom_call.1} parent=5 // pred_check
        _
      $region30: #{tpu_custom_call.1} parent=5 // pred_check_branch
        %193 = sbr.rel (%p190) target = $region32
      $region31: #{tpu_custom_call.1} parent=5 // pred_region
        %s194 = ssub.s32 %s12, 1
        %s195 = smul.u32 32, %s22
        %p196 = scmp.lt.s32.totalorder %s195, 63
        %s197 = scalar_select %p196, %s195, 63
        %p198 = scmp.lt.s32.totalorder %s24, 0
        %s199 = scalar_select %p198, %s24, 0
        %s200 = sadd.s32 %s199, %s197
        %s201 = smul.addr %s200, 4
        %s202 = scalar_lea.vmem %s0, %s201
        %p203 = pneg %p59
        %p204 = pneg %p56
        %p205 = scmp.lt.s32.totalorder %s24, 0
        %s206 = scalar_select %p205, %s24, 0
        %p207 = scmp.lt.s32.totalorder %s23, 0
        %s208 = scalar_select %p207, %s23, 0
        %s209 = sadd.s32 %s208, %s206
        %s210 = smul.addr %s209, 2
        %s211 = scalar_lea.vmem %s1, %s210
        %p212 = pneg %p87
        %p213 = pneg %p84
        %p214 = scmp.lt.s32.totalorder %s23, 0
        %s215 = scalar_select %p214, %s23, 0
        %s216 = scalar_lea.vmem %s2, %s215
        %p217 = pneg %p113
        %p218 = pneg %p110
        %p219 = pneg %p141
        %p220 = pneg %p138
        %s221 = sand.u32 %s128, 1
        %s222 = scalar_lea.sflag [#allocation4], %s221
        %s223 = sand.u32 %s128, 1
        %s224 = smul.addr %s223, 256
        %s225 = scalar_lea.vmem [#allocation3], %s224
        %s226 = smul.u32 32, %s22
        %p227 = scmp.lt.s32.totalorder %s226, 63
        %s228 = scalar_select %p227, %s226, 63
        %p229 = scmp.lt.s32.totalorder %s24, 0
        %s230 = scalar_select %p229, %s24, 0
        %s231 = sadd.s32 %s230, %s228
        %s232 = smul.addr %s231, 4
        %s233 = scalar_lea.vmem %s0, %s232
        %s234 = smul.u32 32, %s22
        %p235 = scmp.lt.s32.totalorder %s24, 0
        %s236 = scalar_select %p235, %s24, 0
        %p237 = scmp.lt.s32.totalorder %s23, 0
        %s238 = scalar_select %p237, %s23, 0
        %s239 = sadd.s32 %s238, %s236
        %s240 = smul.addr %s239, 2
        %s241 = scalar_lea.vmem %s1, %s240
        %p242 = scmp.lt.s32.totalorder %s23, 0
        %s243 = scalar_select %p242, %s23, 0
        %s244 = scalar_lea.vmem %s2, %s243
        %s245 = smul.u32 32, %s22
        %p247 = scmp.eq.s32.totalorder %s24, 0
        // Predicated region
        $region33: #{tpu_custom_call.1} parent=31 // pred_check
          %p248 = pneg %p247
        $region34: #{tpu_custom_call.1} parent=31 // pred_check_branch
          %250 = sbr.rel (%p248) target = $region36
        $region35: #{tpu_custom_call.1} parent=31 // pred_region
          %251 = vst [vmem:[#allocation2] sm:$0xff] 0.0
          %252 = vst [vmem:[#allocation2 + $0x8] sm:$0xff] 0.0
          %253 = vst [vmem:[#allocation2 + $0x10] sm:$0xff] 0.0
          %254 = vst [vmem:[#allocation2 + $0x18] sm:$0xff] 0.0
          %255 = vst [vmem:[#allocation2 + $0x20] sm:$0xff] 0.0
          %256 = vst [vmem:[#allocation2 + $0x28] sm:$0xff] 0.0
          %257 = vst [vmem:[#allocation2 + $0x30] sm:$0xff] 0.0
          %258 = vst [vmem:[#allocation2 + $0x38] sm:$0xff] 0.0
          %259 = vst [vmem:[#allocation2 + $0x40] sm:$0xff] 0.0
          %260 = vst [vmem:[#allocation2 + $0x48] sm:$0xff] 0.0
          %261 = vst [vmem:[#allocation2 + $0x50] sm:$0xff] 0.0
          %262 = vst [vmem:[#allocation2 + $0x58] sm:$0xff] 0.0
          %263 = vst [vmem:[#allocation2 + $0x60] sm:$0xff] 0.0
          %264 = vst [vmem:[#allocation2 + $0x68] sm:$0xff] 0.0
          %265 = vst [vmem:[#allocation2 + $0x70] sm:$0xff] 0.0
          %266 = vst [vmem:[#allocation2 + $0x78] sm:$0xff] 0.0
          %267 = vst [vmem:[#allocation2 + $0x80] sm:$0xff] 0.0
          %268 = vst [vmem:[#allocation2 + $0x88] sm:$0xff] 0.0
          %269 = vst [vmem:[#allocation2 + $0x90] sm:$0xff] 0.0
          %270 = vst [vmem:[#allocation2 + $0x98] sm:$0xff] 0.0
          %271 = vst [vmem:[#allocation2 + $0xa0] sm:$0xff] 0.0
          %272 = vst [vmem:[#allocation2 + $0xa8] sm:$0xff] 0.0
          %273 = vst [vmem:[#allocation2 + $0xb0] sm:$0xff] 0.0
          %274 = vst [vmem:[#allocation2 + $0xb8] sm:$0xff] 0.0
          %275 = vst [vmem:[#allocation2 + $0xc0] sm:$0xff] 0.0
          %276 = vst [vmem:[#allocation2 + $0xc8] sm:$0xff] 0.0
          %277 = vst [vmem:[#allocation2 + $0xd0] sm:$0xff] 0.0
          %278 = vst [vmem:[#allocation2 + $0xd8] sm:$0xff] 0.0
          %279 = vst [vmem:[#allocation2 + $0xe0] sm:$0xff] 0.0
          %280 = vst [vmem:[#allocation2 + $0xe8] sm:$0xff] 0.0
          %281 = vst [vmem:[#allocation2 + $0xf0] sm:$0xff] 0.0
          %282 = vst [vmem:[#allocation2 + $0xf8] sm:$0xff] 0.0
        $region36: #{tpu_custom_call.1} parent=31 // pred_fallthru
          _
        %v283 = vld [vmem:[#allocation2] sm:$0xff]
        %v284 = vld [vmem:[#allocation2 + $0x8] sm:$0xff]
        %v285 = vld [vmem:[#allocation2 + $0x10] sm:$0xff]
        %v286 = vld [vmem:[#allocation2 + $0x18] sm:$0xff]
        %v287 = vld [vmem:[#allocation2 + $0x20] sm:$0xff]
        %v288 = vld [vmem:[#allocation2 + $0x28] sm:$0xff]
        %v289 = vld [vmem:[#allocation2 + $0x30] sm:$0xff]
        %v290 = vld [vmem:[#allocation2 + $0x38] sm:$0xff]
        %v291 = vld [vmem:[#allocation2 + $0x40] sm:$0xff]
        %v292 = vld [vmem:[#allocation2 + $0x48] sm:$0xff]
        %v293 = vld [vmem:[#allocation2 + $0x50] sm:$0xff]
        %v294 = vld [vmem:[#allocation2 + $0x58] sm:$0xff]
        %v295 = vld [vmem:[#allocation2 + $0x60] sm:$0xff]
        %v296 = vld [vmem:[#allocation2 + $0x68] sm:$0xff]
        %v297 = vld [vmem:[#allocation2 + $0x70] sm:$0xff]
        %v298 = vld [vmem:[#allocation2 + $0x78] sm:$0xff]
        %v299 = vld [vmem:[#allocation2 + $0x80] sm:$0xff]
        %v300 = vld [vmem:[#allocation2 + $0x88] sm:$0xff]
        %v301 = vld [vmem:[#allocation2 + $0x90] sm:$0xff]
        %v302 = vld [vmem:[#allocation2 + $0x98] sm:$0xff]
        %v303 = vld [vmem:[#allocation2 + $0xa0] sm:$0xff]
        %v304 = vld [vmem:[#allocation2 + $0xa8] sm:$0xff]
        %v305 = vld [vmem:[#allocation2 + $0xb0] sm:$0xff]
        %v306 = vld [vmem:[#allocation2 + $0xb8] sm:$0xff]
        %v307 = vld [vmem:[#allocation2 + $0xc0] sm:$0xff]
        %v308 = vld [vmem:[#allocation2 + $0xc8] sm:$0xff]
        %v309 = vld [vmem:[#allocation2 + $0xd0] sm:$0xff]
        %v310 = vld [vmem:[#allocation2 + $0xd8] sm:$0xff]
        %v311 = vld [vmem:[#allocation2 + $0xe0] sm:$0xff]
        %v312 = vld [vmem:[#allocation2 + $0xe8] sm:$0xff]
        %v313 = vld [vmem:[#allocation2 + $0xf0] sm:$0xff]
        %v314 = vld [vmem:[#allocation2 + $0xf8] sm:$0xff]
        %v315 = vld [vmem:[%s233] sm:$0xf]
        %v316 = vld [vmem:[%s233 + $0x4] sm:$0xf]
        %v317 = vld [vmem:[%s233 + $0x8] sm:$0xf]
        %v318 = vld [vmem:[%s233 + $0xc] sm:$0xf]
        %v319 = vld [vmem:[%s233 + $0x10] sm:$0xf]
        %v320 = vld [vmem:[%s233 + $0x14] sm:$0xf]
        %v321 = vld [vmem:[%s233 + $0x18] sm:$0xf]
        %v322 = vld [vmem:[%s233 + $0x1c] sm:$0xf]
        %v323 = vld [vmem:[%s233 + $0x20] sm:$0xf]
        %v324 = vld [vmem:[%s233 + $0x24] sm:$0xf]
        %v325 = vld [vmem:[%s233 + $0x28] sm:$0xf]
        %v326 = vld [vmem:[%s233 + $0x2c] sm:$0xf]
        %v327 = vld [vmem:[%s233 + $0x30] sm:$0xf]
        %v328 = vld [vmem:[%s233 + $0x34] sm:$0xf]
        %v329 = vld [vmem:[%s233 + $0x38] sm:$0xf]
        %v330 = vld [vmem:[%s233 + $0x3c] sm:$0xf]
        %v331 = vld [vmem:[%s233 + $0x40] sm:$0xf]
        %v332 = vld [vmem:[%s233 + $0x44] sm:$0xf]
        %v333 = vld [vmem:[%s233 + $0x48] sm:$0xf]
        %v334 = vld [vmem:[%s233 + $0x4c] sm:$0xf]
        %v335 = vld [vmem:[%s233 + $0x50] sm:$0xf]
        %v336 = vld [vmem:[%s233 + $0x54] sm:$0xf]
        %v337 = vld [vmem:[%s233 + $0x58] sm:$0xf]
        %v338 = vld [vmem:[%s233 + $0x5c] sm:$0xf]
        %v339 = vld [vmem:[%s233 + $0x60] sm:$0xf]
        %v340 = vld [vmem:[%s233 + $0x64] sm:$0xf]
        %v341 = vld [vmem:[%s233 + $0x68] sm:$0xf]
        %v342 = vld [vmem:[%s233 + $0x6c] sm:$0xf]
        %v343 = vld [vmem:[%s233 + $0x70] sm:$0xf]
        %v344 = vld [vmem:[%s233 + $0x74] sm:$0xf]
        %v345 = vld [vmem:[%s233 + $0x78] sm:$0xf]
        %v346 = vld [vmem:[%s233 + $0x7c] sm:$0xf]
        %v347 = vld [vmem:[%s241] sm:$0x3]
        %v380 = vunpack.c.l.b16 %v315
        %v381 = vunpack.c.l.b16 %v316
        %v382 = vunpack.c.l.b16 %v317
        %v383 = vunpack.c.l.b16 %v318
        %v384 = vunpack.c.l.b16 %v319
        %v385 = vunpack.c.l.b16 %v320
        %v386 = vunpack.c.l.b16 %v321
        %v387 = vunpack.c.l.b16 %v322
        %v388 = vunpack.c.l.b16 %v323
        %v389 = vunpack.c.l.b16 %v324
        %v390 = vunpack.c.l.b16 %v325
        %v391 = vunpack.c.l.b16 %v326
        %v392 = vunpack.c.l.b16 %v327
        %v393 = vunpack.c.l.b16 %v328
        %v394 = vunpack.c.l.b16 %v329
        %v395 = vunpack.c.l.b16 %v330
        %v396 = vunpack.c.l.b16 %v331
        %v397 = vunpack.c.l.b16 %v332
        %v398 = vunpack.c.l.b16 %v333
        %v399 = vunpack.c.l.b16 %v334
        %v400 = vunpack.c.l.b16 %v335
        %v401 = vunpack.c.l.b16 %v336
        %v402 = vunpack.c.l.b16 %v337
        %v403 = vunpack.c.l.b16 %v338
        %v404 = vunpack.c.l.b16 %v339
        %v405 = vunpack.c.l.b16 %v340
        %v406 = vunpack.c.l.b16 %v341
        %v407 = vunpack.c.l.b16 %v342
        %v408 = vunpack.c.l.b16 %v343
        %v409 = vunpack.c.l.b16 %v344
        %v410 = vunpack.c.l.b16 %v345
        %v411 = vunpack.c.l.b16 %v346
        %v412 = vpack.c.b16 %v381, %v380
        %v413 = vpack.c.b16 %v383, %v382
        %v414 = vpack.c.b16 %v385, %v384
        %v415 = vpack.c.b16 %v387, %v386
        %v416 = vpack.c.b16 %v389, %v388
        %v417 = vpack.c.b16 %v391, %v390
        %v418 = vpack.c.b16 %v393, %v392
        %v419 = vpack.c.b16 %v395, %v394
        %v420 = vpack.c.b16 %v397, %v396
        %v421 = vpack.c.b16 %v399, %v398
        %v422 = vpack.c.b16 %v401, %v400
        %v423 = vpack.c.b16 %v403, %v402
        %v424 = vpack.c.b16 %v405, %v404
        %v425 = vpack.c.b16 %v407, %v406
        %v426 = vpack.c.b16 %v409, %v408
        %v427 = vpack.c.b16 %v411, %v410
        %vm428 = vcmask 31744
        %v430 = vsel %vm428, %v412, 0
        %v433 = vsel %vm428, %v413, 0
        %v436 = vsel %vm428, %v414, 0
        %v439 = vsel %vm428, %v415, 0
        %v442 = vsel %vm428, %v416, 0
        %v445 = vsel %vm428, %v417, 0
        %v448 = vsel %vm428, %v418, 0
        %v451 = vsel %vm428, %v419, 0
        %v454 = vsel %vm428, %v420, 0
        %v457 = vsel %vm428, %v421, 0
        %v460 = vsel %vm428, %v422, 0
        %v463 = vsel %vm428, %v423, 0
        %v466 = vsel %vm428, %v424, 0
        %v469 = vsel %vm428, %v425, 0
        %v472 = vsel %vm428, %v426, 0
        %v475 = vsel %vm428, %v427, 0
        %vm477 = vcmask 1041408
        %v479 = vsel %vm477, %v347, 0
        %481 = vmatprep.subr.bf16.mxu0 0
        %482 = vmatpush1.bf16.msra.mxu0 %v479
        %483 = vmatprep.subr.bf16.mxu0 0
        %484 = vmatpush1.bf16.msra.mxu0 0
        %485 = vmatprep.subr.bf16.mxu0 0
        %486 = vmatpush1.bf16.msra.mxu0 0
        %487 = vmatprep.subr.bf16.mxu0 0
        %488 = vmatpush1.bf16.msra.mxu0 0
        %489 = vmatprep.subr.bf16.mxu0 0
        %490 = vmatpush1.bf16.msra.mxu0 0
        %491 = vmatprep.subr.bf16.mxu0 0
        %492 = vmatpush1.bf16.msra.mxu0 0
        %493 = vmatprep.subr.bf16.mxu0 0
        %494 = vmatpush1.bf16.msra.mxu0 0
        %495 = vmatprep.subr.bf16.mxu0 0
        %496 = vmatpush1.bf16.msra.mxu0 0
        %497 = vmatprep.subr.bf16.mxu0 0
        %498 = vmatpush1.bf16.msra.mxu0 0
        %499 = vmatprep.subr.bf16.mxu0 0
        %500 = vmatpush1.bf16.msra.mxu0 0
        %501 = vmatprep.subr.bf16.mxu0 0
        %502 = vmatpush1.bf16.msra.mxu0 0
        %503 = vmatprep.subr.bf16.mxu0 0
        %504 = vmatpush1.bf16.msra.mxu0 0
        %505 = vmatprep.subr.bf16.mxu0 0
        %506 = vmatpush1.bf16.msra.mxu0 0
        %507 = vmatprep.subr.bf16.mxu0 0
        %508 = vmatpush1.bf16.msra.mxu0 0
        %509 = vmatprep.subr.bf16.mxu0 0
        %510 = vmatpush1.bf16.msra.mxu0 0
        %511 = vmatprep.subr.bf16.mxu0 0
        %512 = vmatpush1.bf16.msra.mxu0 0
        %513 = vmatprep.mubr.bf16.mxu0 0
        %514 = vmatmul.mubr.bf16.gmra.mrb[0].mxu0 %v430
        %v515 = vpop.f32.mrb[0].mxu0
        %v516 = vadd.f32 0.0, %v515
        %v517 = vpop.f32.mrb[0].mxu0
        %v518 = vpop.f32.mrb[0].mxu0
        %v519 = vadd.f32 0.0, %v518
        %v520 = vpop.f32.mrb[0].mxu0
        %521 = vmatprep.mubr.bf16.mxu0 0
        %522 = vmatmul.mubr.bf16.gmra.mrb[0].mxu0 %v433
        %v523 = vpop.f32.mrb[0].mxu0
        %v524 = vadd.f32 0.0, %v523
        %v525 = vpop.f32.mrb[0].mxu0
        %v526 = vpop.f32.mrb[0].mxu0
        %v527 = vadd.f32 0.0, %v526
        %v528 = vpop.f32.mrb[0].mxu0
        %529 = vmatprep.mubr.bf16.mxu0 0
        %530 = vmatmul.mubr.bf16.gmra.mrb[0].mxu0 %v436
        %v531 = vpop.f32.mrb[0].mxu0
        %v532 = vadd.f32 0.0, %v531
        %v533 = vpop.f32.mrb[0].mxu0
        %v534 = vpop.f32.mrb[0].mxu0
        %v535 = vadd.f32 0.0, %v534
        %v536 = vpop.f32.mrb[0].mxu0
        %537 = vmatprep.mubr.bf16.mxu0 0
        %538 = vmatmul.mubr.bf16.gmra.mrb[0].mxu0 %v439
        %v539 = vpop.f32.mrb[0].mxu0
        %v540 = vadd.f32 0.0, %v539
        %v541 = vpop.f32.mrb[0].mxu0
        %v542 = vpop.f32.mrb[0].mxu0
        %v543 = vadd.f32 0.0, %v542
        %v544 = vpop.f32.mrb[0].mxu0
        %545 = vmatprep.mubr.bf16.mxu0 0
        %546 = vmatmul.mubr.bf16.gmra.mrb[0].mxu0 %v442
        %v547 = vpop.f32.mrb[0].mxu0
        %v548 = vadd.f32 0.0, %v547
        %v549 = vpop.f32.mrb[0].mxu0
        %v550 = vpop.f32.mrb[0].mxu0
        %v551 = vadd.f32 0.0, %v550
        %v552 = vpop.f32.mrb[0].mxu0
        %553 = vmatprep.mubr.bf16.mxu0 0
        %554 = vmatmul.mubr.bf16.gmra.mrb[0].mxu0 %v445
        %v555 = vpop.f32.mrb[0].mxu0
        %v556 = vadd.f32 0.0, %v555
        %v557 = vpop.f32.mrb[0].mxu0
        %v558 = vpop.f32.mrb[0].mxu0
        %v559 = vadd.f32 0.0, %v558
        %v560 = vpop.f32.mrb[0].mxu0
        %561 = vmatprep.mubr.bf16.mxu0 0
        %562 = vmatmul.mubr.bf16.gmra.mrb[0].mxu0 %v448
        %v563 = vpop.f32.mrb[0].mxu0
        %v564 = vadd.f32 0.0, %v563
        %v565 = vpop.f32.mrb[0].mxu0
        %v566 = vpop.f32.mrb[0].mxu0
        %v567 = vadd.f32 0.0, %v566
        %v568 = vpop.f32.mrb[0].mxu0
        %569 = vmatprep.mubr.bf16.mxu0 0
        %570 = vmatmul.mubr.bf16.gmra.mrb[0].mxu0 %v451
        %v571 = vpop.f32.mrb[0].mxu0
        %v572 = vadd.f32 0.0, %v571
        %v573 = vpop.f32.mrb[0].mxu0
        %v574 = vpop.f32.mrb[0].mxu0
        %v575 = vadd.f32 0.0, %v574
        %v576 = vpop.f32.mrb[0].mxu0
        %577 = vmatprep.mubr.bf16.mxu0 0
        %578 = vmatmul.mubr.bf16.gmra.mrb[0].mxu0 %v454
        %v579 = vpop.f32.mrb[0].mxu0
        %v580 = vadd.f32 0.0, %v579
        %v581 = vpop.f32.mrb[0].mxu0
        %v582 = vpop.f32.mrb[0].mxu0
        %v583 = vadd.f32 0.0, %v582
        %v584 = vpop.f32.mrb[0].mxu0
        %585 = vmatprep.mubr.bf16.mxu0 0
        %586 = vmatmul.mubr.bf16.gmra.mrb[0].mxu0 %v457
        %v587 = vpop.f32.mrb[0].mxu0
        %v588 = vadd.f32 0.0, %v587
        %v589 = vpop.f32.mrb[0].mxu0
        %v590 = vpop.f32.mrb[0].mxu0
        %v591 = vadd.f32 0.0, %v590
        %v592 = vpop.f32.mrb[0].mxu0
        %593 = vmatprep.mubr.bf16.mxu0 0
        %594 = vmatmul.mubr.bf16.gmra.mrb[0].mxu0 %v460
        %v595 = vpop.f32.mrb[0].mxu0
        %v596 = vadd.f32 0.0, %v595
        %v597 = vpop.f32.mrb[0].mxu0
        %v598 = vpop.f32.mrb[0].mxu0
        %v599 = vadd.f32 0.0, %v598
        %v600 = vpop.f32.mrb[0].mxu0
        %601 = vmatprep.mubr.bf16.mxu0 0
        %602 = vmatmul.mubr.bf16.gmra.mrb[0].mxu0 %v463
        %v603 = vpop.f32.mrb[0].mxu0
        %v604 = vadd.f32 0.0, %v603
        %v605 = vpop.f32.mrb[0].mxu0
        %v606 = vpop.f32.mrb[0].mxu0
        %v607 = vadd.f32 0.0, %v606
        %v608 = vpop.f32.mrb[0].mxu0
        %609 = vmatprep.mubr.bf16.mxu0 0
        %610 = vmatmul.mubr.bf16.gmra.mrb[0].mxu0 %v466
        %v611 = vpop.f32.mrb[0].mxu0
        %v612 = vadd.f32 0.0, %v611
        %v613 = vpop.f32.mrb[0].mxu0
        %v614 = vpop.f32.mrb[0].mxu0
        %v615 = vadd.f32 0.0, %v614
        %v616 = vpop.f32.mrb[0].mxu0
        %617 = vmatprep.mubr.bf16.mxu0 0
        %618 = vmatmul.mubr.bf16.gmra.mrb[0].mxu0 %v469
        %v619 = vpop.f32.mrb[0].mxu0
        %v620 = vadd.f32 0.0, %v619
        %v621 = vpop.f32.mrb[0].mxu0
        %v622 = vpop.f32.mrb[0].mxu0
        %v623 = vadd.f32 0.0, %v622
        %v624 = vpop.f32.mrb[0].mxu0
        %625 = vmatprep.mubr.bf16.mxu0 0
        %626 = vmatmul.mubr.bf16.gmra.mrb[0].mxu0 %v472
        %v627 = vpop.f32.mrb[0].mxu0
        %v628 = vadd.f32 0.0, %v627
        %v629 = vpop.f32.mrb[0].mxu0
        %v630 = vpop.f32.mrb[0].mxu0
        %v631 = vadd.f32 0.0, %v630
        %v632 = vpop.f32.mrb[0].mxu0
        %633 = vmatprep.mubr.bf16.mxu0 0
        %634 = vmatmul.mubr.bf16.gmra.mrb[0].mxu0 %v475
        %v635 = vpop.f32.mrb[0].mxu0
        %v636 = vadd.f32 0.0, %v635
        %v637 = vpop.f32.mrb[0].mxu0
        %v638 = vpop.f32.mrb[0].mxu0
        %v639 = vadd.f32 0.0, %v638
        %v640 = vpop.f32.mrb[0].mxu0
        %641 = vdwg.mxu0
        %v642 = vadd.f32 %v283, %v516
        %v643 = vadd.f32 %v284, %v519
        %v644 = vadd.f32 %v285, %v524
        %v645 = vadd.f32 %v286, %v527
        %v646 = vadd.f32 %v287, %v532
        %v647 = vadd.f32 %v288, %v535
        %v648 = vadd.f32 %v289, %v540
        %v649 = vadd.f32 %v290, %v543
        %v650 = vadd.f32 %v291, %v548
        %v651 = vadd.f32 %v292, %v551
        %v652 = vadd.f32 %v293, %v556
        %v653 = vadd.f32 %v294, %v559
        %v654 = vadd.f32 %v295, %v564
        %v655 = vadd.f32 %v296, %v567
        %v656 = vadd.f32 %v297, %v572
        %v657 = vadd.f32 %v298, %v575
        %v658 = vadd.f32 %v299, %v580
        %v659 = vadd.f32 %v300, %v583
        %v660 = vadd.f32 %v301, %v588
        %v661 = vadd.f32 %v302, %v591
        %v662 = vadd.f32 %v303, %v596
        %v663 = vadd.f32 %v304, %v599
        %v664 = vadd.f32 %v305, %v604
        %v665 = vadd.f32 %v306, %v607
        %v666 = vadd.f32 %v307, %v612
        %v667 = vadd.f32 %v308, %v615
        %v668 = vadd.f32 %v309, %v620
        %v669 = vadd.f32 %v310, %v623
        %v670 = vadd.f32 %v311, %v628
        %v671 = vadd.f32 %v312, %v631
        %v672 = vadd.f32 %v313, %v636
        %v673 = vadd.f32 %v314, %v639
        %674 = vst [vmem:[#allocation2] sm:$0xff] %v642
        %675 = vst [vmem:[#allocation2 + $0x8] sm:$0xff] %v643
        %676 = vst [vmem:[#allocation2 + $0x10] sm:$0xff] %v644
        %677 = vst [vmem:[#allocation2 + $0x18] sm:$0xff] %v645
        %678 = vst [vmem:[#allocation2 + $0x20] sm:$0xff] %v646
        %679 = vst [vmem:[#allocation2 + $0x28] sm:$0xff] %v647
        %680 = vst [vmem:[#allocation2 + $0x30] sm:$0xff] %v648
        %681 = vst [vmem:[#allocation2 + $0x38] sm:$0xff] %v649
        %682 = vst [vmem:[#allocation2 + $0x40] sm:$0xff] %v650
        %683 = vst [vmem:[#allocation2 + $0x48] sm:$0xff] %v651
        %684 = vst [vmem:[#allocation2 + $0x50] sm:$0xff] %v652
        %685 = vst [vmem:[#allocation2 + $0x58] sm:$0xff] %v653
        %686 = vst [vmem:[#allocation2 + $0x60] sm:$0xff] %v654
        %687 = vst [vmem:[#allocation2 + $0x68] sm:$0xff] %v655
        %688 = vst [vmem:[#allocation2 + $0x70] sm:$0xff] %v656
        %689 = vst [vmem:[#allocation2 + $0x78] sm:$0xff] %v657
        %690 = vst [vmem:[#allocation2 + $0x80] sm:$0xff] %v658
        %691 = vst [vmem:[#allocation2 + $0x88] sm:$0xff] %v659
        %692 = vst [vmem:[#allocation2 + $0x90] sm:$0xff] %v660
        %693 = vst [vmem:[#allocation2 + $0x98] sm:$0xff] %v661
        %694 = vst [vmem:[#allocation2 + $0xa0] sm:$0xff] %v662
        %695 = vst [vmem:[#allocation2 + $0xa8] sm:$0xff] %v663
        %696 = vst [vmem:[#allocation2 + $0xb0] sm:$0xff] %v664
        %697 = vst [vmem:[#allocation2 + $0xb8] sm:$0xff] %v665
        %698 = vst [vmem:[#allocation2 + $0xc0] sm:$0xff] %v666
        %699 = vst [vmem:[#allocation2 + $0xc8] sm:$0xff] %v667
        %700 = vst [vmem:[#allocation2 + $0xd0] sm:$0xff] %v668
        %701 = vst [vmem:[#allocation2 + $0xd8] sm:$0xff] %v669
        %702 = vst [vmem:[#allocation2 + $0xe0] sm:$0xff] %v670
        %703 = vst [vmem:[#allocation2 + $0xe8] sm:$0xff] %v671
        %704 = vst [vmem:[#allocation2 + $0xf0] sm:$0xff] %v672
        %705 = vst [vmem:[#allocation2 + $0xf8] sm:$0xff] %v673
        // Predicated region
        $region37: #{tpu_custom_call.1} parent=31 // pred_check
          %p706 = pneg %p247
        $region38: #{tpu_custom_call.1} parent=31 // pred_check_branch
          %708 = sbr.rel (%p706) target = $region40
        $region39: #{tpu_custom_call.1} parent=31 // pred_region
          %v709 = vld [vmem:[#allocation2] sm:$0xff]
          %v710 = vld [vmem:[#allocation2 + $0x8] sm:$0xff]
          %v711 = vld [vmem:[#allocation2 + $0x10] sm:$0xff]
          %v712 = vld [vmem:[#allocation2 + $0x18] sm:$0xff]
          %v713 = vld [vmem:[#allocation2 + $0x20] sm:$0xff]
          %v714 = vld [vmem:[#allocation2 + $0x28] sm:$0xff]
          %v715 = vld [vmem:[#allocation2 + $0x30] sm:$0xff]
          %v716 = vld [vmem:[#allocation2 + $0x38] sm:$0xff]
          %v717 = vld [vmem:[#allocation2 + $0x40] sm:$0xff]
          %v718 = vld [vmem:[#allocation2 + $0x48] sm:$0xff]
          %v719 = vld [vmem:[#allocation2 + $0x50] sm:$0xff]
          %v720 = vld [vmem:[#allocation2 + $0x58] sm:$0xff]
          %v721 = vld [vmem:[#allocation2 + $0x60] sm:$0xff]
          %v722 = vld [vmem:[#allocation2 + $0x68] sm:$0xff]
          %v723 = vld [vmem:[#allocation2 + $0x70] sm:$0xff]
          %v724 = vld [vmem:[#allocation2 + $0x78] sm:$0xff]
          %v725 = vld [vmem:[#allocation2 + $0x80] sm:$0xff]
          %v726 = vld [vmem:[#allocation2 + $0x88] sm:$0xff]
          %v727 = vld [vmem:[#allocation2 + $0x90] sm:$0xff]
          %v728 = vld [vmem:[#allocation2 + $0x98] sm:$0xff]
          %v729 = vld [vmem:[#allocation2 + $0xa0] sm:$0xff]
          %v730 = vld [vmem:[#allocation2 + $0xa8] sm:$0xff]
          %v731 = vld [vmem:[#allocation2 + $0xb0] sm:$0xff]
          %v732 = vld [vmem:[#allocation2 + $0xb8] sm:$0xff]
          %v733 = vld [vmem:[#allocation2 + $0xc0] sm:$0xff]
          %v734 = vld [vmem:[#allocation2 + $0xc8] sm:$0xff]
          %v735 = vld [vmem:[#allocation2 + $0xd0] sm:$0xff]
          %v736 = vld [vmem:[#allocation2 + $0xd8] sm:$0xff]
          %v737 = vld [vmem:[#allocation2 + $0xe0] sm:$0xff]
          %v738 = vld [vmem:[#allocation2 + $0xe8] sm:$0xff]
          %v739 = vld [vmem:[#allocation2 + $0xf0] sm:$0xff]
          %v740 = vld [vmem:[#allocation2 + $0xf8] sm:$0xff]
          %v741 = vld [vmem:[%s244] sm:$0x1]
          %v743 = vlaneseq
          %v744 = vshrl.u32 %v743, 7
          %v745 = vsub.s32 0, %v744
          %v746 = vrot.slane %v741, %v745
          %v748 = vadd.f32 %v709, %v746
          %v749 = vadd.f32 %v710, %v746
          %v750 = vadd.f32 %v711, %v746
          %v751 = vadd.f32 %v712, %v746
          %v752 = vadd.f32 %v713, %v746
          %v753 = vadd.f32 %v714, %v746
          %v754 = vadd.f32 %v715, %v746
          %v755 = vadd.f32 %v716, %v746
          %v756 = vadd.f32 %v717, %v746
          %v757 = vadd.f32 %v718, %v746
          %v758 = vadd.f32 %v719, %v746
          %v759 = vadd.f32 %v720, %v746
          %v760 = vadd.f32 %v721, %v746
          %v761 = vadd.f32 %v722, %v746
          %v762 = vadd.f32 %v723, %v746
          %v763 = vadd.f32 %v724, %v746
          %v764 = vadd.f32 %v725, %v746
          %v765 = vadd.f32 %v726, %v746
          %v766 = vadd.f32 %v727, %v746
          %v767 = vadd.f32 %v728, %v746
          %v768 = vadd.f32 %v729, %v746
          %v769 = vadd.f32 %v730, %v746
          %v770 = vadd.f32 %v731, %v746
          %v771 = vadd.f32 %v732, %v746
          %v772 = vadd.f32 %v733, %v746
          %v773 = vadd.f32 %v734, %v746
          %v774 = vadd.f32 %v735, %v746
          %v775 = vadd.f32 %v736, %v746
          %v776 = vadd.f32 %v737, %v746
          %v777 = vadd.f32 %v738, %v746
          %v778 = vadd.f32 %v739, %v746
          %v779 = vadd.f32 %v740, %v746
          %vm780 = vcmp.gt.f32.partialorder %v748, 0.0
          %vm781 = vcmp.gt.f32.partialorder %v749, 0.0
          %vm782 = vcmp.gt.f32.partialorder %v750, 0.0
          %vm783 = vcmp.gt.f32.partialorder %v751, 0.0
          %vm784 = vcmp.gt.f32.partialorder %v752, 0.0
          %vm785 = vcmp.gt.f32.partialorder %v753, 0.0
          %vm786 = vcmp.gt.f32.partialorder %v754, 0.0
          %vm787 = vcmp.gt.f32.partialorder %v755, 0.0
          %vm788 = vcmp.gt.f32.partialorder %v756, 0.0
          %vm789 = vcmp.gt.f32.partialorder %v757, 0.0
          %vm790 = vcmp.gt.f32.partialorder %v758, 0.0
          %vm791 = vcmp.gt.f32.partialorder %v759, 0.0
          %vm792 = vcmp.gt.f32.partialorder %v760, 0.0
          %vm793 = vcmp.gt.f32.partialorder %v761, 0.0
          %vm794 = vcmp.gt.f32.partialorder %v762, 0.0
          %vm795 = vcmp.gt.f32.partialorder %v763, 0.0
          %vm796 = vcmp.gt.f32.partialorder %v764, 0.0
          %vm797 = vcmp.gt.f32.partialorder %v765, 0.0
          %vm798 = vcmp.gt.f32.partialorder %v766, 0.0
          %vm799 = vcmp.gt.f32.partialorder %v767, 0.0
          %vm800 = vcmp.gt.f32.partialorder %v768, 0.0
          %vm801 = vcmp.gt.f32.partialorder %v769, 0.0
          %vm802 = vcmp.gt.f32.partialorder %v770, 0.0
          %vm803 = vcmp.gt.f32.partialorder %v771, 0.0
          %vm804 = vcmp.gt.f32.partialorder %v772, 0.0
          %vm805 = vcmp.gt.f32.partialorder %v773, 0.0
          %vm806 = vcmp.gt.f32.partialorder %v774, 0.0
          %vm807 = vcmp.gt.f32.partialorder %v775, 0.0
          %vm808 = vcmp.gt.f32.partialorder %v776, 0.0
          %vm809 = vcmp.gt.f32.partialorder %v777, 0.0
          %vm810 = vcmp.gt.f32.partialorder %v778, 0.0
          %vm811 = vcmp.gt.f32.partialorder %v779, 0.0
          %v812 = vmul.f32 %v748, 0.01
          %v813 = vmul.f32 %v749, 0.01
          %v814 = vmul.f32 %v750, 0.01
          %v815 = vmul.f32 %v751, 0.01
          %v816 = vmul.f32 %v752, 0.01
          %v817 = vmul.f32 %v753, 0.01
          %v818 = vmul.f32 %v754, 0.01
          %v819 = vmul.f32 %v755, 0.01
          %v820 = vmul.f32 %v756, 0.01
          %v821 = vmul.f32 %v757, 0.01
          %v822 = vmul.f32 %v758, 0.01
          %v823 = vmul.f32 %v759, 0.01
          %v824 = vmul.f32 %v760, 0.01
          %v825 = vmul.f32 %v761, 0.01
          %v826 = vmul.f32 %v762, 0.01
          %v827 = vmul.f32 %v763, 0.01
          %v828 = vmul.f32 %v764, 0.01
          %v829 = vmul.f32 %v765, 0.01
          %v830 = vmul.f32 %v766, 0.01
          %v831 = vmul.f32 %v767, 0.01
          %v832 = vmul.f32 %v768, 0.01
          %v833 = vmul.f32 %v769, 0.01
          %v834 = vmul.f32 %v770, 0.01
          %v835 = vmul.f32 %v771, 0.01
          %v836 = vmul.f32 %v772, 0.01
          %v837 = vmul.f32 %v773, 0.01
          %v838 = vmul.f32 %v774, 0.01
          %v839 = vmul.f32 %v775, 0.01
          %v840 = vmul.f32 %v776, 0.01
          %v841 = vmul.f32 %v777, 0.01
          %v842 = vmul.f32 %v778, 0.01
          %v843 = vmul.f32 %v779, 0.01
          %v844 = vsel %vm780, %v748, %v812
          %v845 = vsel %vm781, %v749, %v813
          %v846 = vsel %vm782, %v750, %v814
          %v847 = vsel %vm783, %v751, %v815
          %v848 = vsel %vm784, %v752, %v816
          %v849 = vsel %vm785, %v753, %v817
          %v850 = vsel %vm786, %v754, %v818
          %v851 = vsel %vm787, %v755, %v819
          %v852 = vsel %vm788, %v756, %v820
          %v853 = vsel %vm789, %v757, %v821
          %v854 = vsel %vm790, %v758, %v822
          %v855 = vsel %vm791, %v759, %v823
          %v856 = vsel %vm792, %v760, %v824
          %v857 = vsel %vm793, %v761, %v825
          %v858 = vsel %vm794, %v762, %v826
          %v859 = vsel %vm795, %v763, %v827
          %v860 = vsel %vm796, %v764, %v828
          %v861 = vsel %vm797, %v765, %v829
          %v862 = vsel %vm798, %v766, %v830
          %v863 = vsel %vm799, %v767, %v831
          %v864 = vsel %vm800, %v768, %v832
          %v865 = vsel %vm801, %v769, %v833
          %v866 = vsel %vm802, %v770, %v834
          %v867 = vsel %vm803, %v771, %v835
          %v868 = vsel %vm804, %v772, %v836
          %v869 = vsel %vm805, %v773, %v837
          %v870 = vsel %vm806, %v774, %v838
          %v871 = vsel %vm807, %v775, %v839
          %v872 = vsel %vm808, %v776, %v840
          %v873 = vsel %vm809, %v777, %v841
          %v874 = vsel %vm810, %v778, %v842
          %v875 = vsel %vm811, %v779, %v843
          %876 = vst [vmem:[%s225] sm:$0xff] %v844
          %877 = vst [vmem:[%s225 + $0x8] sm:$0xff] %v845
          %878 = vst [vmem:[%s225 + $0x10] sm:$0xff] %v846
          %879 = vst [vmem:[%s225 + $0x18] sm:$0xff] %v847
          %880 = vst [vmem:[%s225 + $0x20] sm:$0xff] %v848
          %881 = vst [vmem:[%s225 + $0x28] sm:$0xff] %v849
          %882 = vst [vmem:[%s225 + $0x30] sm:$0xff] %v850
          %883 = vst [vmem:[%s225 + $0x38] sm:$0xff] %v851
          %884 = vst [vmem:[%s225 + $0x40] sm:$0xff] %v852
          %885 = vst [vmem:[%s225 + $0x48] sm:$0xff] %v853
          %886 = vst [vmem:[%s225 + $0x50] sm:$0xff] %v854
          %887 = vst [vmem:[%s225 + $0x58] sm:$0xff] %v855
          %888 = vst [vmem:[%s225 + $0x60] sm:$0xff] %v856
          %889 = vst [vmem:[%s225 + $0x68] sm:$0xff] %v857
          %890 = vst [vmem:[%s225 + $0x70] sm:$0xff] %v858
          %891 = vst [vmem:[%s225 + $0x78] sm:$0xff] %v859
          %892 = vst [vmem:[%s225 + $0x80] sm:$0xff] %v860
          %893 = vst [vmem:[%s225 + $0x88] sm:$0xff] %v861
          %894 = vst [vmem:[%s225 + $0x90] sm:$0xff] %v862
          %895 = vst [vmem:[%s225 + $0x98] sm:$0xff] %v863
          %896 = vst [vmem:[%s225 + $0xa0] sm:$0xff] %v864
          %897 = vst [vmem:[%s225 + $0xa8] sm:$0xff] %v865
          %898 = vst [vmem:[%s225 + $0xb0] sm:$0xff] %v866
          %899 = vst [vmem:[%s225 + $0xb8] sm:$0xff] %v867
          %900 = vst [vmem:[%s225 + $0xc0] sm:$0xff] %v868
          %901 = vst [vmem:[%s225 + $0xc8] sm:$0xff] %v869
          %902 = vst [vmem:[%s225 + $0xd0] sm:$0xff] %v870
          %903 = vst [vmem:[%s225 + $0xd8] sm:$0xff] %v871
          %904 = vst [vmem:[%s225 + $0xe0] sm:$0xff] %v872
          %905 = vst [vmem:[%s225 + $0xe8] sm:$0xff] %v873
          %906 = vst [vmem:[%s225 + $0xf0] sm:$0xff] %v874
          %907 = vst [vmem:[%s225 + $0xf8] sm:$0xff] %v875
        $region40: #{tpu_custom_call.1} parent=31 // pred_fallthru
          _
        %s908 = sand.u32 %s128, 1
        %s909 = scalar_lea.sflag [#allocation4], %s908
        %s910 = sand.u32 %s128, 1
        %s911 = smul.addr %s910, 256
        %s912 = scalar_lea.vmem [#allocation3], %s911
        // Predicated region
        $region41: #{tpu_custom_call.1} parent=31 // pred_check
          %p913 = pneg %p138
        $region42: #{tpu_custom_call.1} parent=31 // pred_check_branch
          %915 = sbr.rel (%p913) target = $region44
        $region43: #{tpu_custom_call.1} parent=31 // pred_region
          %s916 = smul.u32 32, %s22
          %s918 = ssub.s32 4096, 4096
          %919 = vsyncadd %s909, %s918
          %s920 = sadd.s32 %s23, %s916
          %s921 = smul.addr %s920, 128
          %s922 = scalar_lea.hbm %s3, %s921
          %s923 = sshll.u32 %s912, 4
          %s924 = int_to_ptr.vmem [resolvable:$true] %s923
          %929 = dma.vmem_to_hbm [thread:$0]  %s924, 4096, %s922, %s909, 128, 128, 8
        $region44: #{tpu_custom_call.1} parent=31 // pred_fallthru
          _
      $region32: #{tpu_custom_call.1} parent=5 // pred_fallthru
        _
      %p930 = scmp.le.s32.totalorder 2, %s12
      // Predicated region
      $region45: #{tpu_custom_call.1} parent=5 // pred_check
        %p931 = pneg %p930
      $region46: #{tpu_custom_call.1} parent=5 // pred_check_branch
        %933 = sbr.rel (%p931) target = $region48
      $region47: #{tpu_custom_call.1} parent=5 // pred_region
        %s934 = ssub.s32 %s12, 2
        // Predicated region
        $region49: #{tpu_custom_call.1} parent=47 // pred_check
          %p935 = pneg %p144
        $region50: #{tpu_custom_call.1} parent=47 // pred_check_branch
          %937 = sbr.rel (%p935) target = $region52
        $region51: #{tpu_custom_call.1} parent=47 // pred_region
          %s938 = sand.u32 %s129, 1
          %s939 = scalar_lea.sflag [#allocation4], %s938
          %s940 = sand.u32 %s129, 1
          %s941 = smul.addr %s940, 256
          %s942 = scalar_lea.vmem [#allocation3], %s941
          %943 = dma.done %s939, 4096
        $region52: #{tpu_custom_call.1} parent=47 // pred_fallthru
          _
      $region48: #{tpu_custom_call.1} parent=5 // pred_fallthru
        _
    $region6: #{tpu_custom_call.1} parent=1 // loop_footer
      %s16 = sadd.s32 1, %s12
    $region7: #{tpu_custom_call.1} parent=1 // loop_footer_branch
      %11 = sbr.rel target = $region3
    $region8: #{tpu_custom_call.1} parent=1 // loop_exit
      _
    %944 = vsyncpa [#allocation4], 1
    %s945 = scalar_lea.sflag [#allocation4], 1
    %946 = vsyncpa %s945, 1

</llo_original>
